<compile_context>
chip_gen: v5e
topology: v5e:2x2
jax: 0.10.0
libtpu: 0.0.40
codegen_flags: <defaults>
</compile_context>

<pallas_src>
from functools import partial

import jax
import jax.numpy as jnp
from jax.experimental import pallas as pl
from jax.experimental.pallas import tpu as pltpu

BN_EPS = 1e-5
LEAKY_SLOPE = 0.2
MAX_BATCH_TILE = 16384                    # multiple of 128
Z_TILE_BUDGET_BYTES = 8 * 1024 * 1024     # double-buffered z tile budget (v5e safe)


def _round_up(x, m):
    return ((x + m - 1) // m) * m


def _disc_kernel(z_ref, w1_ref, w2_ref, slab_ref, out_ref):
    """One batch tile. z block is (TB, F) natural layout; intermediates and the
    output are lane-dense with the batch on the lane axis."""
    z_blk = z_ref[...]                      # (TB, F) f32 (BN already folded into w1/b1)
    w1 = w1_ref[...]                        # (H1, F)  == W1 * bn_scale
    w2 = w2_ref[...]                        # (H2, H1)
    slab = slab_ref[...]                    # (Hm, 4)  packed small params

    H1 = w1.shape[0]
    H2 = w2.shape[0]
    b1 = slab[:H1, 0:1]                     # (H1, 1)  folded bias
    b2 = slab[:H2, 1:2]                     # (H2, 1)
    w3 = slab[:H2, 2:3]                     # (H2, 1)  last-layer weights
    b3 = slab[0:1, 3:4]                     # (1, 1)

    # ---- Linear 1 (BN folded) : contract F of both operands -> (H1, TB) ----
    h1 = jax.lax.dot_general(
        w1, z_blk,
        dimension_numbers=(((1,), (1,)), ((), ())),
        preferred_element_type=jnp.float32,
    ) + b1
    # LeakyReLU(0.2): single VALU op.
    h1 = jnp.maximum(h1, LEAKY_SLOPE * h1)

    # ---- Linear 2 + Tanh -> (H2, TB) ----
    h2 = jnp.tanh(jnp.dot(w2, h1, preferred_element_type=jnp.float32) + b2)

    # ---- Linear 3 + Sigmoid -> lane-dense (1, TB) ----
    logits = jnp.sum(h2 * w3, axis=0, keepdims=True) + b3
    out_ref[...] = jax.nn.sigmoid(logits)


def _xla_forward(z, p):
    """Fused-XLA fast path for small batches (same math as the kernel path)."""
    mean = jnp.mean(z, axis=0)
    var = jnp.maximum(jnp.mean(z * z, axis=0) - mean * mean, 0.0)
    x = (z - mean) * (p["gamma"] * jax.lax.rsqrt(var + BN_EPS)) + p["beta"]
    h1 = x @ p["w1"].T + p["b1"]
    h1 = jnp.maximum(h1, LEAKY_SLOPE * h1)
    h2 = jnp.tanh(h1 @ p["w2"].T + p["b2"])
    return jax.nn.sigmoid(h2 @ p["w3"].T + p["b3"])


@partial(jax.jit, static_argnames=("min_pallas_batch",))
def disc_two_class_forward(z, params, *, min_pallas_batch=1024):
    """z: (B, fusion_dim) float32.  params: PyTorch-layout BN/Linear params.

    Weight layout matches PyTorch: w1 (H1, F), w2 (H2, H1), w3 (1, H2).
    Returns (B, 1) sigmoid outputs, matching the nn.Module.
    """
    z = z.astype(jnp.float32)
    B, F = z.shape

    # Small-batch fast path: the pallas_call boundary blocks XLA fusion and its
    # fixed launch/grid cost dominates at tiny B on every TPU generation.
    if B < min_pallas_batch:
        return _xla_forward(z, params)

    w1, w2, w3 = params["w1"], params["w2"], params["w3"]
    H1, H2 = w1.shape[0], w2.shape[0]

    # ---- BatchNorm1d training-mode statistics, single pass over z ----
    mean = jnp.mean(z, axis=0)                                   # (F,)
    mean_sq = jnp.mean(z * z, axis=0)                            # (F,)
    var = jnp.maximum(mean_sq - mean * mean, 0.0)                # biased variance
    inv_std = jax.lax.rsqrt(var + BN_EPS)
    scale = params["gamma"] * inv_std                            # (F,)
    shift = params["beta"] - mean * scale                        # (F,)

    # ---- Fold BN into Linear 1 (once, outside the kernel) ----
    w1_eff = w1 * scale[None, :]                                 # (H1, F)
    b1_eff = w1 @ shift + params["b1"]                           # (H1,)

    # ---- Pack small params into one slab -> single tiny DMA ----
    Hm = max(H1, H2, 8)
    slab = jnp.zeros((Hm, 4), jnp.float32)
    slab = slab.at[:H1, 0].set(b1_eff)
    slab = slab.at[:H2, 1].set(params["b2"])
    slab = slab.at[:H2, 2].set(w3[0])
    slab = slab.at[0, 3].set(params["b3"][0])

    # ---- Batch tile: large (amortize ~0.35 us/grid-step), multiple of 128,
    #      capped by a v5e-safe double-buffer budget, and split so large B
    #      gives >= 2 tiles for the two v7x TensorCores. ----
    tb_vmem_cap = max(128, (Z_TILE_BUDGET_BYTES // (2 * 4 * F)) // 128 * 128)
    tb_split = max(128, _round_up(pl.cdiv(B, 2), 128))
    TB = min(MAX_BATCH_TILE, tb_vmem_cap, tb_split)
    num_tiles = pl.cdiv(B, TB)               # ragged tail handled by Pallas

    out = pl.pallas_call(
        _disc_kernel,
        out_shape=jax.ShapeDtypeStruct((1, B), jnp.float32),
        grid=(num_tiles,),
        in_specs=[
            pl.BlockSpec((TB, F), lambda i: (i, 0)),     # z tile, natural layout
            pl.BlockSpec((H1, F), lambda i: (0, 0)),     # w1_eff (resident)
            pl.BlockSpec((H2, H1), lambda i: (0, 0)),    # w2     (resident)
            pl.BlockSpec((Hm, 4), lambda i: (0, 0)),     # packed small params
        ],
        out_specs=pl.BlockSpec((1, TB), lambda i: (0, i)),
        compiler_params=pltpu.CompilerParams(
            dimension_semantics=("parallel",)),
    )(z, w1_eff, w2, slab)

    return out.T                                                  # (B, 1)


def init_params(key, fusion_dim, h1, h2):
    """Deterministic init mirroring PyTorch shapes (weights stored (out, in))."""
    ks = jax.random.split(key, 6)

    def linear(kw, kb, fan_in, fan_out):
        bound = 1.0 / jnp.sqrt(jnp.float32(fan_in))
        w = jax.random.uniform(kw, (fan_out, fan_in), jnp.float32, -bound, bound)
        b = jax.random.uniform(kb, (fan_out,), jnp.float32, -bound, bound)
        return w, b

    w1, b1 = linear(ks[0], ks[1], fusion_dim, h1)
    w2, b2 = linear(ks[2], ks[3], h1, h2)
    w3, b3 = linear(ks[4], ks[5], h2, 1)
    return {
        "gamma": jnp.ones((fusion_dim,), jnp.float32),
        "beta": jnp.zeros((fusion_dim,), jnp.float32),
        "w1": w1, "b1": b1,
        "w2": w2, "b2": b2,
        "w3": w3, "b3": b3,
    }


def _reference(z, p):
    """Pure-JAX reference with PyTorch (two-pass BN) semantics."""
    mean = jnp.mean(z, axis=0, keepdims=True)
    var = jnp.mean((z - mean) ** 2, axis=0, keepdims=True)
    x = (z - mean) / jnp.sqrt(var + BN_EPS) * p["gamma"] + p["beta"]
    h1 = x @ p["w1"].T + p["b1"]
    h1 = jnp.where(h1 >= 0, h1, LEAKY_SLOPE * h1)
    h2 = jnp.tanh(h1 @ p["w2"].T + p["b2"])
    return jax.nn.sigmoid(h2 @ p["w3"].T + p["b3"])


if __name__ == "__main__":
    # args.fusion_dim=32, args.disc_hidden_dim1=32, args.disc_hidden_dim2=16
    FUSION, H1, H2 = 32, 32, 16

    key = jax.random.PRNGKey(0)
    kz, kp, kz2 = jax.random.split(key, 3)
    params = init_params(kp, FUSION, H1, H2)

    # Primary (module-sized) check -- force the Pallas path.
    B = 8
    z = jax.random.normal(kz, (B, FUSION), jnp.float32)
    out = disc_two_class_forward(z, params, min_pallas_batch=0)
    out = jax.block_until_ready(out)
    ref = _reference(z, params)
    assert out.shape == (B, 1)
    assert jnp.allclose(out, ref, atol=3e-5, rtol=3e-5)

    # Secondary check: multi-tile grid with a ragged last block (B % TB != 0).
    B2 = 300
    z2 = jax.random.normal(kz2, (B2, FUSION), jnp.float32)
    out2 = jax.block_until_ready(
        disc_two_class_forward(z2, params, min_pallas_batch=0))
    ref2 = _reference(z2, params)
    assert out2.shape == (B2, 1)
    assert jnp.allclose(out2, ref2, atol=3e-5, rtol=3e-5)

    print("KERNEL_OK")
</pallas_src>

<mosaic_0001>
module attributes {stable_mosaic.version = 11 : i64} {
  func.func @_disc_kernel(%arg0: i32, %arg1: memref<128x32xf32, #tpu.memory_space<vmem>>, %arg2: memref<32x32xf32, #tpu.memory_space<vmem>>, %arg3: memref<16x32xf32, #tpu.memory_space<vmem>>, %arg4: memref<32x4xf32, #tpu.memory_space<vmem>>, %arg5: memref<1x128xf32, #tpu.memory_space<vmem>>) attributes {dimension_semantics = [#tpu.dimension_semantics<parallel>], iteration_bounds = array<i64: 1>, scalar_prefetch = 0 : i64, scratch_operands = 0 : i64, tpu.core_type = #tpu.core_type<tc>, window_params = [{transform_indices = @transform_0, window_bounds = array<i64: 128, 32>}, {pipeline_mode = #tpu.pipeline_mode<synchronous>, transform_indices = @transform_1, window_bounds = array<i64: 32, 32>}, {pipeline_mode = #tpu.pipeline_mode<synchronous>, transform_indices = @transform_2, window_bounds = array<i64: 16, 32>}, {pipeline_mode = #tpu.pipeline_mode<synchronous>, transform_indices = @transform_3, window_bounds = array<i64: 32, 4>}, {transform_indices = @transform_4, window_bounds = array<i64: 1, 128>}]} {
    %c0 = arith.constant 0 : index
    %c0_0 = arith.constant 0 : index
    %0 = vector.load %arg1[%c0, %c0_0] : memref<128x32xf32, #tpu.memory_space<vmem>>, vector<128x32xf32>
    %c0_1 = arith.constant 0 : index
    %c0_2 = arith.constant 0 : index
    %1 = vector.load %arg2[%c0_1, %c0_2] : memref<32x32xf32, #tpu.memory_space<vmem>>, vector<32x32xf32>
    %c0_3 = arith.constant 0 : index
    %c0_4 = arith.constant 0 : index
    %2 = vector.load %arg3[%c0_3, %c0_4] : memref<16x32xf32, #tpu.memory_space<vmem>>, vector<16x32xf32>
    %c0_5 = arith.constant 0 : index
    %c0_6 = arith.constant 0 : index
    %3 = vector.load %arg4[%c0_5, %c0_6] : memref<32x4xf32, #tpu.memory_space<vmem>>, vector<32x4xf32>
    %4 = vector.extract_strided_slice %3 {offsets = [0, 0], sizes = [32, 1], strides = [1, 1]} : vector<32x4xf32> to vector<32x1xf32>
    %5 = vector.extract_strided_slice %3 {offsets = [0, 1], sizes = [16, 1], strides = [1, 1]} : vector<32x4xf32> to vector<16x1xf32>
    %6 = vector.extract_strided_slice %3 {offsets = [0, 2], sizes = [16, 1], strides = [1, 1]} : vector<32x4xf32> to vector<16x1xf32>
    %7 = vector.extract_strided_slice %3 {offsets = [0, 3], sizes = [1, 1], strides = [1, 1]} : vector<32x4xf32> to vector<1x1xf32>
    %cst = arith.constant dense<0.000000e+00> : vector<32x128xf32>
    %8 = tpu.matmul %1, %0, %cst {dimension_numbers = #tpu.dot_dimension_numbers<[1], [1], [0], [0], [0, 0, 1, 0], [], []>} : vector<32x32xf32>, vector<128x32xf32>, vector<32x128xf32> -> vector<32x128xf32>
    %9 = vector.broadcast %4 : vector<32x1xf32> to vector<32x128xf32>
    %10 = arith.addf %8, %9 : vector<32x128xf32>
    %cst_7 = arith.constant 2.000000e-01 : f32
    %11 = vector.broadcast %cst_7 : f32 to vector<32x128xf32>
    %12 = arith.mulf %11, %10 : vector<32x128xf32>
    %13 = arith.maximumf %10, %12 : vector<32x128xf32>
    %cst_8 = arith.constant dense<0.000000e+00> : vector<16x128xf32>
    %14 = tpu.matmul %2, %13, %cst_8 {dimension_numbers = #tpu.dot_dimension_numbers<[1], [0], [0], [1], [0, 0, 1, 1], [], []>} : vector<16x32xf32>, vector<32x128xf32>, vector<16x128xf32> -> vector<16x128xf32>
    %15 = vector.broadcast %5 : vector<16x1xf32> to vector<16x128xf32>
    %16 = arith.addf %14, %15 : vector<16x128xf32>
    %17 = math.tanh %16 : vector<16x128xf32>
    %18 = vector.broadcast %6 : vector<16x1xf32> to vector<16x128xf32>
    %19 = arith.mulf %17, %18 : vector<16x128xf32>
    %cst_9 = arith.constant dense<0.000000e+00> : vector<128xf32>
    %20 = vector.multi_reduction <add>, %19, %cst_9 [0] : vector<16x128xf32> to vector<128xf32>
    %21 = vector.shape_cast %20 : vector<128xf32> to vector<1x128xf32>
    %22 = vector.broadcast %7 : vector<1x1xf32> to vector<1x128xf32>
    %23 = arith.addf %21, %22 : vector<1x128xf32>
    %24 = arith.negf %23 : vector<1x128xf32>
    %25 = math.exp %24 : vector<1x128xf32>
    %cst_10 = arith.constant 1.000000e+00 : f32
    %26 = vector.broadcast %cst_10 : f32 to vector<1x128xf32>
    %27 = arith.addf %26, %25 : vector<1x128xf32>
    %28 = arith.divf %26, %27 : vector<1x128xf32>
    %c0_11 = arith.constant 0 : index
    %c0_12 = arith.constant 0 : index
    %29 = vector.load %arg5[%c0_11, %c0_12] : memref<1x128xf32, #tpu.memory_space<vmem>>, vector<1x128xf32>
    tpu.vector_store %arg5[%c0_11, %c0_12], %28 {strides = array<i32>} : memref<1x128xf32, #tpu.memory_space<vmem>>, vector<1x128xf32>,
    return
  }
  func.func @transform_0(%arg0: i32) -> (i32, i32) {
    %c0_i32 = arith.constant 0 : i32
    %c0_i32_0 = arith.constant 0 : i32
    return %arg0, %c0_i32 : i32, i32
  }
  func.func @transform_1(%arg0: i32) -> (i32, i32) {
    %c0_i32 = arith.constant 0 : i32
    %c0_i32_0 = arith.constant 0 : i32
    %c0_i32_1 = arith.constant 0 : i32
    return %c0_i32, %c0_i32_0 : i32, i32
  }
  func.func @transform_2(%arg0: i32) -> (i32, i32) {
    %c0_i32 = arith.constant 0 : i32
    %c0_i32_0 = arith.constant 0 : i32
    %c0_i32_1 = arith.constant 0 : i32
    return %c0_i32, %c0_i32_0 : i32, i32
  }
  func.func @transform_3(%arg0: i32) -> (i32, i32) {
    %c0_i32 = arith.constant 0 : i32
    %c0_i32_0 = arith.constant 0 : i32
    %c0_i32_1 = arith.constant 0 : i32
    return %c0_i32, %c0_i32_0 : i32, i32
  }
  func.func @transform_4(%arg0: i32) -> (i32, i32) {
    %c0_i32 = arith.constant 0 : i32
    %c0_i32_0 = arith.constant 0 : i32
    return %c0_i32, %arg0 : i32, i32
  }
}

</mosaic_0001>

<llo_original>
// kernel: disc_two_class_forward.1
$region0: #{disc_two_class_forward.1}
  #allocation0 [shape = 'u32[]', space=smem, size = 0x4, offset = 0x4, fixed_abs, tag = 'smem constant byte address 0x4 - core index']
  #allocation1 [shape = 'u32[72,128]{1,0:T(1,128)}', space=vmem, size = 0x9000, scoped, tag = 'internal scratch']
  %s0 = inlined_call_operand.vmem [shape: f32[8,32], index: 0, kind: input, shape index: {}]
  %s1 = inlined_call_operand.vmem [shape: f32[32,32], index: 1, kind: input, shape index: {}]
  %s2 = inlined_call_operand.vmem [shape: f32[16,32], index: 2, kind: input, shape index: {}]
  %s3 = inlined_call_operand.vmem [shape: f32[32,4], index: 3, kind: input, shape index: {}]
  %s4 = inlined_call_operand.hbm [shape: f32[1,8], index: 4, kind: output, shape index: {}]
  %s5 = sld [smem:[#allocation0]]
  $region26: #{disc_two_class_forward.1} parent=0
    _
  %s7 = ssub.s32 1, %s5
  %s8 = scalar_select 0, %s7, %s5
  $region1: #{disc_two_class_forward.1} parent=0
    #allocation2 [shape = 'u8[512]{0}', space=vmem, size = 0x400, scoped, tag = 'output window, operand 0, single buffered']
    #allocation3 [shape = 's32[1]{0}', space=sflag, size = 0x4, scoped, tag = 'scoped memory for disc_two_class_forward.1']
    %9 = vsyncpa [#allocation3], 0
    // Predicated region
    $region2: #{disc_two_class_forward.1} parent=1 // pred_check
      _
    $region3: #{disc_two_class_forward.1} parent=1 // pred_check_branch
      %11 = sbr.rel (0) target = $region5
    $region4: #{disc_two_class_forward.1} parent=1 // pred_region
      _
    $region5: #{disc_two_class_forward.1} parent=1 // pred_fallthru
      _
    // Predicated region
    $region6: #{disc_two_class_forward.1} parent=1 // pred_check
      _
    $region7: #{disc_two_class_forward.1} parent=1 // pred_check_branch
      %13 = sbr.rel (0) target = $region9
    $region8: #{disc_two_class_forward.1} parent=1 // pred_region
      _
    $region9: #{disc_two_class_forward.1} parent=1 // pred_fallthru
      _
    // Predicated region
    $region10: #{disc_two_class_forward.1} parent=1 // pred_check
      _
    $region11: #{disc_two_class_forward.1} parent=1 // pred_check_branch
      %15 = sbr.rel (0) target = $region13
    $region12: #{disc_two_class_forward.1} parent=1 // pred_region
      _
    $region13: #{disc_two_class_forward.1} parent=1 // pred_fallthru
      _
    // Predicated region
    $region14: #{disc_two_class_forward.1} parent=1 // pred_check
      _
    $region15: #{disc_two_class_forward.1} parent=1 // pred_check_branch
      %17 = sbr.rel (0) target = $region17
    $region16: #{disc_two_class_forward.1} parent=1 // pred_region
      _
    $region17: #{disc_two_class_forward.1} parent=1 // pred_fallthru
      _
    %v18 = vld [vmem:[%s0] sm:$0xff]
    %v19 = vld [vmem:[%s0 + $0x8] sm:$0xff]
    %v20 = vld [vmem:[%s0 + $0x10] sm:$0xff]
    %v21 = vld [vmem:[%s0 + $0x18] sm:$0xff]
    %v22 = vld [vmem:[%s0 + $0x20] sm:$0xff]
    %v23 = vld [vmem:[%s0 + $0x28] sm:$0xff]
    %v24 = vld [vmem:[%s0 + $0x30] sm:$0xff]
    %v25 = vld [vmem:[%s0 + $0x38] sm:$0xff]
    %v26 = vld [vmem:[%s0 + $0x40] sm:$0xff]
    %v27 = vld [vmem:[%s0 + $0x48] sm:$0xff]
    %v28 = vld [vmem:[%s0 + $0x50] sm:$0xff]
    %v29 = vld [vmem:[%s0 + $0x58] sm:$0xff]
    %v30 = vld [vmem:[%s0 + $0x60] sm:$0xff]
    %v31 = vld [vmem:[%s0 + $0x68] sm:$0xff]
    %v32 = vld [vmem:[%s0 + $0x70] sm:$0xff]
    %v33 = vld [vmem:[%s0 + $0x78] sm:$0xff]
    %v34 = vld [vmem:[%s1] sm:$0xff]
    %v35 = vld [vmem:[%s1 + $0x8] sm:$0xff]
    %v36 = vld [vmem:[%s1 + $0x10] sm:$0xff]
    %v37 = vld [vmem:[%s1 + $0x18] sm:$0xff]
    %v38 = vld [vmem:[%s2] sm:$0xff]
    %v39 = vld [vmem:[%s2 + $0x8] sm:$0xff]
    %v40 = vld [vmem:[%s3] sm:$0xff]
    %v41 = vld [vmem:[%s3 + $0x8] sm:$0xff]
    %v42 = vld [vmem:[%s3 + $0x10] sm:$0xff]
    %v43 = vld [vmem:[%s3 + $0x18] sm:$0xff]
    %45 = vset.pattern.permute.xlu0 0
    %46 = vperm.xlu0 %45, %v40
    %v47 = vpop.permute.xlu0 %46
    %50 = vset.pattern.permute.xlu0 0
    %51 = vperm.xlu0 %50, %v41
    %v52 = vpop.permute.xlu0 %51
    %55 = vset.pattern.permute.xlu0 0
    %56 = vperm.xlu0 %55, %v42
    %v57 = vpop.permute.xlu0 %56
    %60 = vset.pattern.permute.xlu0 0
    %61 = vperm.xlu0 %60, %v43
    %v62 = vpop.permute.xlu0 %61
    %vm64 = vcmask 261120
    %v66 = vsel %vm64, %v34, 0
    %v69 = vsel %vm64, %v35, 0
    %v72 = vsel %vm64, %v36, 0
    %v75 = vsel %vm64, %v37, 0
    %v78 = vsel %vm64, %v18, 0
    %v81 = vsel %vm64, %v19, 0
    %v84 = vsel %vm64, %v20, 0
    %v87 = vsel %vm64, %v21, 0
    %v90 = vsel %vm64, %v22, 0
    %v93 = vsel %vm64, %v23, 0
    %v96 = vsel %vm64, %v24, 0
    %v99 = vsel %vm64, %v25, 0
    %v102 = vsel %vm64, %v26, 0
    %v105 = vsel %vm64, %v27, 0
    %v108 = vsel %vm64, %v28, 0
    %v111 = vsel %vm64, %v29, 0
    %v114 = vsel %vm64, %v30, 0
    %v117 = vsel %vm64, %v31, 0
    %v120 = vsel %vm64, %v32, 0
    %v123 = vsel %vm64, %v33, 0
    %125 = vmatpush.xpose.msra.mxu0 %v123
    %126 = vmatpush.xpose.msra.mxu0 %v120
    %127 = vmatpush.xpose.msra.mxu0 %v117
    %128 = vmatpush.xpose.msra.mxu0 %v114
    %129 = vmatpush.xpose.msra.mxu0 %v111
    %130 = vmatpush.xpose.msra.mxu0 %v108
    %131 = vmatpush.xpose.msra.mxu0 %v105
    %132 = vmatpush.xpose.msra.mxu0 %v102
    %133 = vmatpush.xpose.msra.mxu0 %v99
    %134 = vmatpush.xpose.msra.mxu0 %v96
    %135 = vmatpush.xpose.msra.mxu0 %v93
    %136 = vmatpush.xpose.msra.mxu0 %v90
    %137 = vmatpush.xpose.msra.mxu0 %v87
    %138 = vmatpush.xpose.msra.mxu0 %v84
    %139 = vmatpush.xpose.msra.mxu0 %v81
    %140 = vmatpush.xpose.msra.mxu0 %v78
    %141 = vmatmul.f32.gmra.mxu0 %v66
    %v142 = vpop.f32.mrf.mxu0
    %v143 = vadd.f32 %v47, %v142
    %144 = vmatmul.f32.gmra.mxu0 %v69
    %v145 = vpop.f32.mrf.mxu0
    %v146 = vadd.f32 %v52, %v145
    %147 = vmatmul.f32.gmra.mxu0 %v72
    %v148 = vpop.f32.mrf.mxu0
    %v149 = vadd.f32 %v57, %v148
    %150 = vmatmul.f32.gmra.mxu0 %v75
    %v151 = vpop.f32.mrf.mxu0
    %v152 = vadd.f32 %v62, %v151
    %153 = vdwg.mxu0
    %v154 = vmul.f32 %v143, 0.2
    %v155 = vmul.f32 %v146, 0.2
    %v156 = vmul.f32 %v149, 0.2
    %v157 = vmul.f32 %v152, 0.2
    %v158 = vmax.f32 %v143, %v154
    %v159 = vmax.f32 %v146, %v155
    %v160 = vmax.f32 %v149, %v156
    %v161 = vmax.f32 %v152, %v157
    %162 = vset.pattern.permute.xlu0 1
    %163 = vperm.xlu0 %162, %v40
    %v164 = vpop.permute.xlu0 %163
    %166 = vset.pattern.permute.xlu0 1
    %167 = vperm.xlu0 %166, %v41
    %v168 = vpop.permute.xlu0 %167
    %v171 = vsel %vm64, %v38, 0
    %v174 = vsel %vm64, %v39, 0
    %176 = vmatpush.msra.mxu0 0.0
    %177 = vmatpush.msra.mxu0 0.0
    %178 = vmatpush.msra.mxu0 0.0
    %179 = vmatpush.msra.mxu0 0.0
    %180 = vmatpush.msra.mxu0 0.0
    %181 = vmatpush.msra.mxu0 0.0
    %182 = vmatpush.msra.mxu0 0.0
    %183 = vmatpush.msra.mxu0 0.0
    %184 = vmatpush.msra.mxu0 0.0
    %185 = vmatpush.msra.mxu0 0.0
    %186 = vmatpush.msra.mxu0 0.0
    %187 = vmatpush.msra.mxu0 0.0
    %188 = vmatpush.msra.mxu0 %v161
    %189 = vmatpush.msra.mxu0 %v160
    %190 = vmatpush.msra.mxu0 %v159
    %191 = vmatpush.msra.mxu0 %v158
    %192 = vmatmul.f32.gmra.mxu0 %v171
    %v193 = vpop.f32.mrf.mxu0
    %v194 = vadd.f32 %v164, %v193
    %195 = vmatmul.f32.gmra.mxu0 %v174
    %v196 = vpop.f32.mrf.mxu0
    %v197 = vadd.f32 %v168, %v196
    %198 = vdwg.mxu0
    %v199 = vtanh.pop %v194
    %v200 = vtanh.pop %v197
    %201 = vset.pattern.permute.xlu0 2
    %202 = vperm.xlu0 %201, %v40
    %v203 = vpop.permute.xlu0 %202
    %205 = vset.pattern.permute.xlu0 2
    %206 = vperm.xlu0 %205, %v41
    %v207 = vpop.permute.xlu0 %206
    %v209 = vmul.f32 %v199, %v203
    %v210 = vmul.f32 %v200, %v207
    %v211 = vadd.f32 %v209, %v210
    %v212 = vrot.slane %v211, 4
    %v213 = vadd.f32 %v211, %v212
    %v214 = vrot.slane %v213, 2
    %v215 = vadd.f32 %v213, %v214
    %v216 = vrot.slane %v215, 1
    %v217 = vadd.f32 %v215, %v216
    %218 = vset.pattern.permute.xlu0 3
    %219 = vperm.xlu0 %218, %v40
    %v220 = vpop.permute.xlu0 %219
    %v222 = vadd.f32 %v217, %v220
    %v223 = vxor.u32 %v222, 2147483648
    %v224 = vmul.f32 %v223, 1.442695
    %v225 = vpow.pop %v224
    %v226 = vadd.f32 %v225, 1.0
    %v227 = vrcp.pop %v226
    %v228 = vmul.f32 %v226, %v227
    %v229 = vsub.f32 1.0, %v228
    %v230 = vmul.f32 %v227, %v229
    %v231 = vadd.f32 %v227, %v230
    %vm232 = vweird.f32 %v226
    %vm233 = vweird.f32 %v227
    %vm234 = vmor %vm232, %vm233
    %v235 = vsel %vm234, %v227, %v231
    %v236 = vand.u32 2147483647, %v226
    %vm237 = vcmp.eq.f32.partialorder %v236, 8.507059e+37
    %v238 = vand.u32 %v226, 2147483648
    %v239 = vor.u32 1.1754944e-38, %v238
    %v240 = vsel %vm237, %v239, %v235
    %v241 = vmul.f32 1.0, %v240
    %242 = vst [vmem:[#allocation2] sm:$0x1] %v241
    // Predicated region
    $region18: #{disc_two_class_forward.1} parent=1 // pred_check
      _
    $region19: #{disc_two_class_forward.1} parent=1 // pred_check_branch
      %244 = sbr.rel (0) target = $region21
    $region20: #{disc_two_class_forward.1} parent=1 // pred_region
      %246 = vsyncadd [#allocation3], 0
      %s248 = sshll.u32 [#allocation2], 4
      %s249 = int_to_ptr.vmem [resolvable:$true] %s248
      %s250 = sshll.u32 %s4, 4
      %s251 = int_to_ptr.hbm [resolvable:$true] %s250
      %253 = dma.vmem_to_hbm [thread:$0]  %s249, 16, %s251, [#allocation3]
    $region21: #{disc_two_class_forward.1} parent=1 // pred_fallthru
      _
    // Predicated region
    $region22: #{disc_two_class_forward.1} parent=1 // pred_check
      _
    $region23: #{disc_two_class_forward.1} parent=1 // pred_check_branch
      %255 = sbr.rel (0) target = $region25
    $region24: #{disc_two_class_forward.1} parent=1 // pred_region
      %257 = dma.done [#allocation3], 16
    $region25: #{disc_two_class_forward.1} parent=1 // pred_fallthru
      _
    %258 = vsyncpa [#allocation3], 1

</llo_original>
